<compile_context>
chip_gen: v7x
topology: tpu7x:2x2x1
jax: 0.10.0
libtpu: 0.0.40
codegen_flags: <defaults>
</compile_context>

<pallas_src>
import numpy as np
import jax
import jax.numpy as jnp
from jax.experimental import pallas as pl
from jax.experimental.pallas import tpu as pltpu

# ---------------- configuration (matches module defaults where relevant) ----
NUM_TIMESTEPS = 1000
LAGRANGIAN = 0.001

B, C, H, W = 2, 4, 16, 16          # small NCHW input
HW = H * W                          # 256
N_LANE = B * HW                     # 512  (batch folded into the lane axis)
C_CTX = 8                           # synthetic context_fn output channels
C_HID = 32                          # synthetic denoise_fn hidden channels


def make_schedule():
    # float64 on host (matches torch's np.cumprod over float64), cast once to f32.
    betas = np.linspace(1e-4, 0.02, NUM_TIMESTEPS, dtype=np.float64)
    alphas_cumprod = np.cumprod(1.0 - betas, axis=0)
    return {
        "train_sqrt_alphas_cumprod":
            jnp.asarray(np.sqrt(alphas_cumprod), dtype=jnp.float32),
        "train_sqrt_one_minus_alphas_cumprod":
            jnp.asarray(np.sqrt(1.0 - alphas_cumprod), dtype=jnp.float32),
    }


def init_params(key):
    """Deterministic synthetic weights for context_fn / denoise_fn.

    The packed / pre-cast kernel operands are built ONCE here (hoisted out of
    the jitted forward) so the per-step HLO graph only sees 4 ready weight
    buffers.
    """
    ks = jax.random.split(key, 7)
    s = 0.1
    wcx = s * jax.random.normal(ks[0], (C_CTX, C), jnp.float32)
    wcy = s * jax.random.normal(ks[1], (C_CTX, C), jnp.float32)
    bc = jnp.zeros((C_CTX, 1), jnp.float32)
    w1x = s * jax.random.normal(ks[2], (C_HID, C), jnp.float32)
    w1c = s * jax.random.normal(ks[3], (C_HID, C_CTX), jnp.float32)
    b1 = jnp.zeros((C_HID, 1), jnp.float32)
    wt = s * jax.random.normal(ks[4], (C_HID, 1), jnp.float32)
    w2 = s * jax.random.normal(ks[5], (C, C_HID), jnp.float32)
    b2 = jnp.zeros((C, 1), jnp.float32)

    pad = lambda v: jnp.pad(v, ((0, C_HID - v.shape[0]), (0, 0)))
    packed = {
        # context_fn channel mix over stacked [x; y]
        "wc_bf": jnp.concatenate([wcx, wcy], axis=1).astype(jnp.bfloat16),     # (C_CTX, 2C)
        # denoise_fn layer-1 over stacked [ctx ; x_noisy]  (ctx block first -> tile-aligned)
        "w1_bf": jnp.concatenate([w1c, w1x], axis=1).astype(jnp.bfloat16),     # (C_HID, C_CTX+C)
        "w2_bf": w2.astype(jnp.bfloat16),                                      # (C, C_HID)
        # all biases in one padded buffer: col0=b1, col1=wt, col2=bc(pad), col3=b2(pad)
        "bias": jnp.concatenate([b1, wt, pad(bc), pad(b2)], axis=1),           # (C_HID, 4) f32
    }
    raw = dict(wcx=wcx, wcy=wcy, bc=bc, w1x=w1x, w1c=w1c, b1=b1, wt=wt, w2=w2, b2=b2)
    return {**raw, **packed}


# --------------------------------- kernel -----------------------------------
def _diffusion_kernel(coeff_ref, xyn_ref, wc_ref, w1_ref, w2_ref, bias_ref, loss_ref):
    """Single-invocation fused kernel (no grid).

    coeff_ref : (3, B)   SMEM  rows = [sqrt_ac[t], sqrt_1mac[t], t/T]
    xyn_ref   : (3C, B*HW) VMEM stacked [x; y; noise], batch folded into lanes
    wc/w1/w2  : bf16 pre-packed weights
    bias_ref  : (C_HID, 4) f32 packed biases
    loss_ref  : (1, 1)   SMEM  final training loss
    """
    xyn = xyn_ref[...]                       # one vld stream of the (12, 512) tile
    x = xyn[:C, :]                           # (C, N)
    xy = xyn[:2 * C, :]                      # (2C, N)
    noise = xyn[2 * C:, :]                   # (C, N)

    # packed biases, static ref slices (free)
    b1 = bias_ref[:, 0:1]                    # (C_HID, 1)
    wt = bias_ref[:, 1:2]                    # (C_HID, 1)
    bc = bias_ref[:C_CTX, 2:3]               # (C_CTX, 1)
    b2 = bias_ref[:C, 3:4]                   # (C, 1)

    # ---- rebuild lane-dense per-batch coefficients from SMEM scalars --------
    # lanes [b*HW, (b+1)*HW) belong to batch b (matches the wrapper fold)
    lane = jax.lax.broadcasted_iota(jnp.int32, (1, N_LANE), 1)
    sa = jnp.full((1, N_LANE), coeff_ref[0, 0], jnp.float32)
    sb = jnp.full((1, N_LANE), coeff_ref[1, 0], jnp.float32)
    tn = jnp.full((1, N_LANE), coeff_ref[2, 0], jnp.float32)
    for b in range(1, B):                    # static, tiny (B-1 selects per vector)
        sel = lane >= b * HW
        sa = jnp.where(sel, coeff_ref[0, b], sa)
        sb = jnp.where(sel, coeff_ref[1, b], sb)
        tn = jnp.where(sel, coeff_ref[2, b], tn)

    # ---- context_fn: ONE fused 1x1-conv channel mix over [x; y], ReLU -------
    ctx = jnp.dot(wc_ref[...], xy.astype(jnp.bfloat16),
                  preferred_element_type=jnp.float32)
    ctx = jnp.maximum(ctx + bc, 0.0)                                  # (C_CTX, N) f32

    # ---- q_sample (f32 elementwise; v5e VPU has no bf16) ---------------------
    x_noisy = sa * x + sb * noise                                     # (C, N)

    # ---- denoise_fn: layer-1 fused to a single MXU push over [ctx; x_noisy] -
    hin = jnp.concatenate([ctx, x_noisy], axis=0).astype(jnp.bfloat16)  # (C_CTX+C, N)
    h = jnp.dot(w1_ref[...], hin, preferred_element_type=jnp.float32)
    h = jax.nn.gelu(h + b1 + wt * tn, approximate=True)               # (C_HID, N) f32
    fx = jnp.dot(w2_ref[...], h.astype(jnp.bfloat16),
                 preferred_element_type=jnp.float32) + b2             # (C, N) f32

    # ---- fused loss: sublane partials on the VPU, ONE cross-lane reduce ------
    per_lane = (jnp.sum(jnp.abs(noise - fx), axis=0, keepdims=True)
                * (1.0 / (B * C * HW))                                # (noise-fx).abs().mean()
                + jnp.sum(jnp.abs(ctx), axis=0, keepdims=True)
                * (LAGRANGIAN / (B * C_CTX * HW)))                    # beta * bpp.mean()
    loss_ref[0, 0] = jnp.sum(per_lane)


def _run_kernel(coeff, xyn, p):
    vmem = pl.BlockSpec(memory_space=pltpu.MemorySpace.VMEM)
    smem = pl.BlockSpec(memory_space=pltpu.MemorySpace.SMEM)
    return pl.pallas_call(
        _diffusion_kernel,
        out_shape=jax.ShapeDtypeStruct((1, 1), jnp.float32),
        in_specs=[smem, vmem, vmem, vmem, vmem, vmem],
        out_specs=smem,
        cost_estimate=pl.CostEstimate(
            flops=600_000, transcendentals=16_384, bytes_accessed=32_000),
    )(coeff, xyn, p["wc_bf"], p["w1_bf"], p["w2_bf"], p["bias"])


# ------------------------------ forward wrapper ------------------------------
@jax.jit
def gaussian_diffusion_forward(params, schedule, images_x, images_y, key):
    """Mirrors GaussianDiffusion.forward(images_x, images_y) training path."""
    kt, kn = jax.random.split(key)
    t = jax.random.randint(kt, (B,), 0, NUM_TIMESTEPS)
    # TODO(synk): noise could be drawn in-kernel (pltpu.prng_seed + prng_random_bits
    # + Box-Muller on the idle EUP) to drop this HLO and its share of the DMA, but
    # that breaks bit-exact parity with the jax.random.normal reference check;
    # instead it rides the single stacked xyn DMA below.
    noise = jax.random.normal(kn, images_x.shape, jnp.float32)

    # one concat + ONE fold transpose for all three image-shaped tensors:
    # (B, 3C, H, W) -> (3C, B*HW), batch folded into the lane axis.
    stacked = jnp.concatenate([images_x, images_y, noise], axis=1)
    xyn = stacked.reshape(B, 3 * C, HW).transpose(1, 0, 2).reshape(3 * C, N_LANE)

    # per-batch q_sample coefficients and t/T as one tiny SMEM operand (3, B)
    coeff = jnp.stack([
        schedule["train_sqrt_alphas_cumprod"][t],
        schedule["train_sqrt_one_minus_alphas_cumprod"][t],
        t.astype(jnp.float32) / NUM_TIMESTEPS,
    ], axis=0)

    loss = _run_kernel(coeff, xyn, params)[0, 0]

    extra_loss = jnp.float32(0.0)                 # context_fn.get_extra_loss()
    # TODO(synk): with aux_loss_weight=0 the reference torch code returns
    # LD / LP / advLoss / dexLoss that are never defined in that branch
    # (NameError); return zero placeholders instead of faking LPIPS/MS-SSIM.
    zero = jnp.float32(0.0)
    return loss, extra_loss, zero, zero, zero, zero


# pure-JAX reference (same math, same randoms, same bf16-around-dot casts)
def _reference(params, schedule, images_x, images_y, key):
    kt, kn = jax.random.split(key)
    t = jax.random.randint(kt, (B,), 0, NUM_TIMESTEPS)
    noise = jax.random.normal(kn, images_x.shape, jnp.float32)
    sa = schedule["train_sqrt_alphas_cumprod"][t][:, None, None]
    sb = schedule["train_sqrt_one_minus_alphas_cumprod"][t][:, None, None]
    tn = (t.astype(jnp.float32) / NUM_TIMESTEPS)[:, None, None]
    x = images_x.reshape(B, C, HW)
    y = images_y.reshape(B, C, HW)
    nz = noise.reshape(B, C, HW)
    bf = lambda a: a.astype(jnp.bfloat16)
    mm = lambda w, a: jnp.einsum("oc,bcp->bop", bf(w), bf(a),
                                 preferred_element_type=jnp.float32)
    ctx = jnp.maximum(mm(params["wcx"], x) + mm(params["wcy"], y)
                      + params["bc"][None], 0.0)
    x_noisy = sa * x + sb * nz
    h = (mm(params["w1x"], x_noisy) + mm(params["w1c"], ctx)
         + params["b1"][None] + params["wt"][None] * tn)
    h = jax.nn.gelu(h, approximate=True)
    fx = mm(params["w2"], h) + params["b2"][None]
    err = jnp.mean(jnp.abs(nz - fx))
    bpp = jnp.mean(jnp.abs(ctx), axis=(1, 2))
    return LAGRANGIAN * jnp.mean(bpp) + err


if __name__ == "__main__":
    root = jax.random.PRNGKey(0)
    k_param, k_x, k_y, k_fwd = jax.random.split(root, 4)

    params = init_params(k_param)
    schedule = make_schedule()

    images_x = jax.random.uniform(k_x, (B, C, H, W), jnp.float32)   # NCHW
    images_y = jax.random.uniform(k_y, (B, C, H, W), jnp.float32)   # NCHW

    out = gaussian_diffusion_forward(params, schedule, images_x, images_y, k_fwd)
    out = jax.block_until_ready(out)

    ref_loss = _reference(params, schedule, images_x, images_y, k_fwd)
    assert jnp.allclose(out[0], ref_loss, rtol=1e-3, atol=1e-3), (out[0], ref_loss)

    print("KERNEL_OK")
</pallas_src>

<mosaic_0001>
module attributes {stable_mosaic.version = 11 : i64} {
  func.func @_diffusion_kernel(%arg0: memref<3x2xf32, #tpu.memory_space<smem>>, %arg1: memref<12x512xf32, #tpu.memory_space<vmem>>, %arg2: memref<8x8xbf16, #tpu.memory_space<vmem>>, %arg3: memref<32x12xbf16, #tpu.memory_space<vmem>>, %arg4: memref<4x32xbf16, #tpu.memory_space<vmem>>, %arg5: memref<32x4xf32, #tpu.memory_space<vmem>>, %arg6: memref<1x1xf32, #tpu.memory_space<smem>>) attributes {dimension_semantics = [], scalar_prefetch = 0 : i64, scratch_operands = 0 : i64, tpu.core_type = #tpu.core_type<tc>} {
    %c0 = arith.constant 0 : index
    %c0_0 = arith.constant 0 : index
    %0 = vector.load %arg1[%c0, %c0_0] : memref<12x512xf32, #tpu.memory_space<vmem>>, vector<12x512xf32>
    %1 = vector.extract_strided_slice %0 {offsets = [0, 0], sizes = [4, 512], strides = [1, 1]} : vector<12x512xf32> to vector<4x512xf32>
    %2 = vector.extract_strided_slice %0 {offsets = [0, 0], sizes = [8, 512], strides = [1, 1]} : vector<12x512xf32> to vector<8x512xf32>
    %3 = vector.extract_strided_slice %0 {offsets = [8, 0], sizes = [4, 512], strides = [1, 1]} : vector<12x512xf32> to vector<4x512xf32>
    %c0_1 = arith.constant 0 : index
    %c0_2 = arith.constant 0 : index
    %4 = vector.load %arg5[%c0_1, %c0_2] : memref<32x4xf32, #tpu.memory_space<vmem>>, vector<32x1xf32>
    %c0_3 = arith.constant 0 : index
    %c1 = arith.constant 1 : index
    %5 = vector.load %arg5[%c0_3, %c1] : memref<32x4xf32, #tpu.memory_space<vmem>>, vector<32x1xf32>
    %c0_4 = arith.constant 0 : index
    %c2 = arith.constant 2 : index
    %6 = vector.load %arg5[%c0_4, %c2] : memref<32x4xf32, #tpu.memory_space<vmem>>, vector<8x1xf32>
    %c0_5 = arith.constant 0 : index
    %c3 = arith.constant 3 : index
    %7 = vector.load %arg5[%c0_5, %c3] : memref<32x4xf32, #tpu.memory_space<vmem>>, vector<4x1xf32>
    %8 = tpu.iota {dimensions = array<i32: 1>} : vector<1x512xi32>
    %c0_6 = arith.constant 0 : index
    %c0_7 = arith.constant 0 : index
    %9 = memref.load %arg0[%c0_6, %c0_7] : memref<3x2xf32, #tpu.memory_space<smem>>
    %10 = vector.broadcast %9 : f32 to vector<1x512xf32>
    %c1_8 = arith.constant 1 : index
    %c0_9 = arith.constant 0 : index
    %11 = memref.load %arg0[%c1_8, %c0_9] : memref<3x2xf32, #tpu.memory_space<smem>>
    %12 = vector.broadcast %11 : f32 to vector<1x512xf32>
    %c2_10 = arith.constant 2 : index
    %c0_11 = arith.constant 0 : index
    %13 = memref.load %arg0[%c2_10, %c0_11] : memref<3x2xf32, #tpu.memory_space<smem>>
    %14 = vector.broadcast %13 : f32 to vector<1x512xf32>
    %c256_i32 = arith.constant 256 : i32
    %15 = vector.broadcast %c256_i32 : i32 to vector<1x512xi32>
    %16 = arith.cmpi sge, %8, %15 : vector<1x512xi32>
    %c0_12 = arith.constant 0 : index
    %c1_13 = arith.constant 1 : index
    %17 = memref.load %arg0[%c0_12, %c1_13] : memref<3x2xf32, #tpu.memory_space<smem>>
    %18 = vector.broadcast %17 : f32 to vector<1x512xf32>
    %19 = arith.select %16, %18, %10 : vector<1x512xi1>, vector<1x512xf32>
    %c1_14 = arith.constant 1 : index
    %c1_15 = arith.constant 1 : index
    %20 = memref.load %arg0[%c1_14, %c1_15] : memref<3x2xf32, #tpu.memory_space<smem>>
    %21 = vector.broadcast %20 : f32 to vector<1x512xf32>
    %22 = arith.select %16, %21, %12 : vector<1x512xi1>, vector<1x512xf32>
    %c2_16 = arith.constant 2 : index
    %c1_17 = arith.constant 1 : index
    %23 = memref.load %arg0[%c2_16, %c1_17] : memref<3x2xf32, #tpu.memory_space<smem>>
    %24 = vector.broadcast %23 : f32 to vector<1x512xf32>
    %25 = arith.select %16, %24, %14 : vector<1x512xi1>, vector<1x512xf32>
    %c0_18 = arith.constant 0 : index
    %c0_19 = arith.constant 0 : index
    %26 = vector.load %arg2[%c0_18, %c0_19] : memref<8x8xbf16, #tpu.memory_space<vmem>>, vector<8x8xbf16>
    %27 = arith.truncf %2 : vector<8x512xf32> to vector<8x512xbf16>
    %cst = arith.constant dense<0.000000e+00> : vector<8x512xf32>
    %28 = tpu.matmul %26, %27, %cst {dimension_numbers = #tpu.dot_dimension_numbers<[1], [0], [0], [1], [0, 0, 1, 1], [], []>} : vector<8x8xbf16>, vector<8x512xbf16>, vector<8x512xf32> -> vector<8x512xf32>
    %29 = vector.broadcast %6 : vector<8x1xf32> to vector<8x512xf32>
    %30 = arith.addf %28, %29 : vector<8x512xf32>
    %cst_20 = arith.constant 0.000000e+00 : f32
    %31 = vector.broadcast %cst_20 : f32 to vector<8x512xf32>
    %32 = arith.maximumf %30, %31 : vector<8x512xf32>
    %33 = vector.broadcast %19 : vector<1x512xf32> to vector<4x512xf32>
    %34 = arith.mulf %33, %1 : vector<4x512xf32>
    %35 = vector.broadcast %22 : vector<1x512xf32> to vector<4x512xf32>
    %36 = arith.mulf %35, %3 : vector<4x512xf32>
    %37 = arith.addf %34, %36 : vector<4x512xf32>
    %38 = tpu.concatenate %32, %37 in 0 : vector<8x512xf32>, vector<4x512xf32> -> vector<12x512xf32>
    %39 = arith.truncf %38 : vector<12x512xf32> to vector<12x512xbf16>
    %c0_21 = arith.constant 0 : index
    %c0_22 = arith.constant 0 : index
    %40 = vector.load %arg3[%c0_21, %c0_22] : memref<32x12xbf16, #tpu.memory_space<vmem>>, vector<32x12xbf16>
    %cst_23 = arith.constant dense<0.000000e+00> : vector<32x512xf32>
    %41 = tpu.matmul %40, %39, %cst_23 {dimension_numbers = #tpu.dot_dimension_numbers<[1], [0], [0], [1], [0, 0, 1, 1], [], []>} : vector<32x12xbf16>, vector<12x512xbf16>, vector<32x512xf32> -> vector<32x512xf32>
    %42 = vector.broadcast %4 : vector<32x1xf32> to vector<32x512xf32>
    %43 = arith.addf %41, %42 : vector<32x512xf32>
    %44 = vector.broadcast %5 : vector<32x1xf32> to vector<32x512xf32>
    %45 = vector.broadcast %25 : vector<1x512xf32> to vector<32x512xf32>
    %46 = arith.mulf %44, %45 : vector<32x512xf32>
    %47 = arith.addf %43, %46 : vector<32x512xf32>
    %48 = arith.mulf %47, %47 : vector<32x512xf32>
    %49 = arith.mulf %47, %48 : vector<32x512xf32>
    %cst_24 = arith.constant 4.471500e-02 : f32
    %50 = vector.broadcast %cst_24 : f32 to vector<32x512xf32>
    %51 = arith.mulf %50, %49 : vector<32x512xf32>
    %52 = arith.addf %47, %51 : vector<32x512xf32>
    %cst_25 = arith.constant 0.797884583 : f32
    %53 = vector.broadcast %cst_25 : f32 to vector<32x512xf32>
    %54 = arith.mulf %53, %52 : vector<32x512xf32>
    %55 = math.tanh %54 : vector<32x512xf32>
    %cst_26 = arith.constant 1.000000e+00 : f32
    %56 = vector.broadcast %cst_26 : f32 to vector<32x512xf32>
    %57 = arith.addf %56, %55 : vector<32x512xf32>
    %cst_27 = arith.constant 5.000000e-01 : f32
    %58 = vector.broadcast %cst_27 : f32 to vector<32x512xf32>
    %59 = arith.mulf %58, %57 : vector<32x512xf32>
    %60 = arith.mulf %47, %59 : vector<32x512xf32>
    %c0_28 = arith.constant 0 : index
    %c0_29 = arith.constant 0 : index
    %61 = vector.load %arg4[%c0_28, %c0_29] : memref<4x32xbf16, #tpu.memory_space<vmem>>, vector<4x32xbf16>
    %62 = arith.truncf %60 : vector<32x512xf32> to vector<32x512xbf16>
    %cst_30 = arith.constant dense<0.000000e+00> : vector<4x512xf32>
    %63 = tpu.matmul %61, %62, %cst_30 {dimension_numbers = #tpu.dot_dimension_numbers<[1], [0], [0], [1], [0, 0, 1, 1], [], []>} : vector<4x32xbf16>, vector<32x512xbf16>, vector<4x512xf32> -> vector<4x512xf32>
    %64 = vector.broadcast %7 : vector<4x1xf32> to vector<4x512xf32>
    %65 = arith.addf %63, %64 : vector<4x512xf32>
    %66 = arith.subf %3, %65 : vector<4x512xf32>
    %67 = math.absf %66 : vector<4x512xf32>
    %cst_31 = arith.constant dense<0.000000e+00> : vector<512xf32>
    %68 = vector.multi_reduction <add>, %67, %cst_31 [0] : vector<4x512xf32> to vector<512xf32>
    %69 = vector.shape_cast %68 : vector<512xf32> to vector<1x512xf32>
    %cst_32 = arith.constant 4.8828125E-4 : f32
    %70 = vector.broadcast %cst_32 : f32 to vector<1x512xf32>
    %71 = arith.mulf %69, %70 : vector<1x512xf32>
    %72 = math.absf %32 : vector<8x512xf32>
    %cst_33 = arith.constant dense<0.000000e+00> : vector<512xf32>
    %73 = vector.multi_reduction <add>, %72, %cst_33 [0] : vector<8x512xf32> to vector<512xf32>
    %74 = vector.shape_cast %73 : vector<512xf32> to vector<1x512xf32>
    %cst_34 = arith.constant 2.44140637E-7 : f32
    %75 = vector.broadcast %cst_34 : f32 to vector<1x512xf32>
    %76 = arith.mulf %74, %75 : vector<1x512xf32>
    %77 = arith.addf %71, %76 : vector<1x512xf32>
    %78 = vector.shape_cast %77 : vector<1x512xf32> to vector<1x1x512xf32>
    %cst_35 = arith.constant dense<0.000000e+00> : vector<1xf32>
    %79 = vector.multi_reduction <add>, %78, %cst_35 [1, 2] : vector<1x1x512xf32> to vector<1xf32>
    %80 = vector.shape_cast %79 : vector<1xf32> to vector<1x1x1xf32>
    %81 = vector.extract %80[0, 0, 0] : f32 from vector<1x1x1xf32>
    %c0_36 = arith.constant 0 : index
    %c0_37 = arith.constant 0 : index
    %82 = memref.load %arg6[%c0_36, %c0_37] : memref<1x1xf32, #tpu.memory_space<smem>>
    memref.store %81, %arg6[%c0_36, %c0_37] : memref<1x1xf32, #tpu.memory_space<smem>>
    return
  }
}

</mosaic_0001>

<llo_original>
// kernel: gaussian_diffusion_forward.21
$region0: #{gaussian_diffusion_forward.21}
  #allocation0 [shape = 'u32[]', space=smem, size = 0x4, offset = 0x4, fixed_abs, tag = 'smem constant byte address 0x4 - core index']
  #allocation1 [shape = 'u32[144,128]{1,0:T(1,128)}', space=vmem, size = 0x12000, scoped, tag = 'internal scratch']
  %s0 = inlined_call_operand.vmem [shape: f32[3,2], index: 0, kind: input, shape index: {}]
  %s1 = inlined_call_operand.vmem [shape: f32[12,512], index: 1, kind: input, shape index: {}]
  %s2 = inlined_call_operand.vmem [shape: bf16[8,8], index: 2, kind: input, shape index: {}]
  %s3 = inlined_call_operand.vmem [shape: bf16[32,12], index: 3, kind: input, shape index: {}]
  %s4 = inlined_call_operand.vmem [shape: bf16[4,32], index: 4, kind: input, shape index: {}]
  %s5 = inlined_call_operand.vmem [shape: f32[32,4], index: 5, kind: input, shape index: {}]
  %s6 = inlined_call_operand.hbm [shape: f32[1,1], index: 6, kind: output, shape index: {}]
  %s7 = sld [smem:[#allocation0]]
  $region38: #{gaussian_diffusion_forward.21} parent=0
    _
  %s9 = ssub.s32 1, %s7
  %s10 = scalar_select 0, %s9, %s7
  $region1: #{gaussian_diffusion_forward.21} parent=0
    #allocation2 [shape = 'u8[2048]{0}', space=smem, size = 0x800, scoped, tag = 'input window, operand 0, single buffered']
    #allocation3 [shape = 's32[1]{0}', space=sflag, size = 0x4, scoped, tag = 'scoped memory for gaussian_diffusion_forward.21']
    #allocation4 [shape = 's32[1]{0}', space=sflag, size = 0x4, scoped, tag = 'scoped memory for gaussian_diffusion_forward.21']
    #allocation5 [shape = 'u8[512]{0}', space=smem, size = 0x200, scoped, tag = 'output window, operand 0, single buffered']
    %11 = vsyncpa [#allocation4], 0
    %12 = vsyncpa [#allocation3], 0
    // Predicated region
    $region2: #{gaussian_diffusion_forward.21} parent=1 // pred_check
      _
    $region3: #{gaussian_diffusion_forward.21} parent=1 // pred_check_branch
      %14 = sbr.rel (0) target = $region5
    $region4: #{gaussian_diffusion_forward.21} parent=1 // pred_region
      %s16 = ssub.s32 64, 64
      %17 = vsyncadd [#allocation4], %s16
      %s19 = sshll.u32 %s0, 4
      %s20 = int_to_ptr.vmem [resolvable:$true] %s19
      %22 = dma.vmem_to_smem %s20, 64, [#allocation2], [#allocation4]
    $region5: #{gaussian_diffusion_forward.21} parent=1 // pred_fallthru
      _
    // Predicated region
    $region6: #{gaussian_diffusion_forward.21} parent=1 // pred_check
      _
    $region7: #{gaussian_diffusion_forward.21} parent=1 // pred_check_branch
      %24 = sbr.rel (0) target = $region9
    $region8: #{gaussian_diffusion_forward.21} parent=1 // pred_region
      _
    $region9: #{gaussian_diffusion_forward.21} parent=1 // pred_fallthru
      _
    // Predicated region
    $region10: #{gaussian_diffusion_forward.21} parent=1 // pred_check
      _
    $region11: #{gaussian_diffusion_forward.21} parent=1 // pred_check_branch
      %26 = sbr.rel (0) target = $region13
    $region12: #{gaussian_diffusion_forward.21} parent=1 // pred_region
      _
    $region13: #{gaussian_diffusion_forward.21} parent=1 // pred_fallthru
      _
    // Predicated region
    $region14: #{gaussian_diffusion_forward.21} parent=1 // pred_check
      _
    $region15: #{gaussian_diffusion_forward.21} parent=1 // pred_check_branch
      %28 = sbr.rel (0) target = $region17
    $region16: #{gaussian_diffusion_forward.21} parent=1 // pred_region
      _
    $region17: #{gaussian_diffusion_forward.21} parent=1 // pred_fallthru
      _
    // Predicated region
    $region18: #{gaussian_diffusion_forward.21} parent=1 // pred_check
      _
    $region19: #{gaussian_diffusion_forward.21} parent=1 // pred_check_branch
      %30 = sbr.rel (0) target = $region21
    $region20: #{gaussian_diffusion_forward.21} parent=1 // pred_region
      _
    $region21: #{gaussian_diffusion_forward.21} parent=1 // pred_fallthru
      _
    // Predicated region
    $region22: #{gaussian_diffusion_forward.21} parent=1 // pred_check
      _
    $region23: #{gaussian_diffusion_forward.21} parent=1 // pred_check_branch
      %32 = sbr.rel (0) target = $region25
    $region24: #{gaussian_diffusion_forward.21} parent=1 // pred_region
      _
    $region25: #{gaussian_diffusion_forward.21} parent=1 // pred_fallthru
      _
    // Predicated region
    $region26: #{gaussian_diffusion_forward.21} parent=1 // pred_check
      _
    $region27: #{gaussian_diffusion_forward.21} parent=1 // pred_check_branch
      %34 = sbr.rel (0) target = $region29
    $region28: #{gaussian_diffusion_forward.21} parent=1 // pred_region
      %35 = dma.done [#allocation4], 64
    $region29: #{gaussian_diffusion_forward.21} parent=1 // pred_fallthru
      _
    %36 = sfence
    %v38 = vld [vmem:[%s1] sm:$0xff]
    %v39 = vld [vmem:[%s1 + $0x8] sm:$0xff]
    %v40 = vld [vmem:[%s1 + $0x10] sm:$0xff]
    %v41 = vld [vmem:[%s1 + $0x18] sm:$0xff]
    %v42 = vld [vmem:[%s1 + $0x20] sm:$0xf]
    %v43 = vld [vmem:[%s1 + $0x28] sm:$0xf]
    %v44 = vld [vmem:[%s1 + $0x30] sm:$0xf]
    %v45 = vld [vmem:[%s1 + $0x38] sm:$0xf]
    %v46 = vld [vmem:[%s5] sm:$0xff]
    %v47 = vld [vmem:[%s5 + $0x8] sm:$0xff]
    %v48 = vld [vmem:[%s5 + $0x10] sm:$0xff]
    %v49 = vld [vmem:[%s5 + $0x18] sm:$0xff]
    %v50 = vld [vmem:[%s5] sm:$0xf]
    %v51 = vlaneseq
    %v52 = vand.u32 %v51, 127
    %v53 = vadd.s32 %v52, 128
    %v54 = vadd.s32 %v52, 256
    %v55 = vadd.s32 %v52, 384
    %s56 = sld [smem:[#allocation2]]
    %v57 = vstv %s56
    %s58 = sld [smem:[#allocation2 + $0x80]]
    %v59 = vstv %s58
    %s60 = sld [smem:[#allocation2 + $0x100]]
    %v61 = vstv %s60
    %vm62 = vcmp.ge.s32.totalorder %v52, 256
    %vm63 = vcmp.ge.s32.totalorder %v53, 256
    %vm64 = vcmp.ge.s32.totalorder %v54, 256
    %vm65 = vcmp.ge.s32.totalorder %v55, 256
    %s66 = sld [smem:[#allocation2 + $0x1]]
    %v67 = vstv %s66
    %v68 = vsel %vm62, %v67, %v57
    %v69 = vsel %vm63, %v67, %v57
    %v70 = vsel %vm64, %v67, %v57
    %v71 = vsel %vm65, %v67, %v57
    %s72 = sld [smem:[#allocation2 + $0x81]]
    %v73 = vstv %s72
    %v74 = vsel %vm62, %v73, %v59
    %v75 = vsel %vm63, %v73, %v59
    %v76 = vsel %vm64, %v73, %v59
    %v77 = vsel %vm65, %v73, %v59
    %s78 = sld [smem:[#allocation2 + $0x101]]
    %v79 = vstv %s78
    %v80 = vsel %vm62, %v79, %v61
    %v81 = vsel %vm63, %v79, %v61
    %v82 = vsel %vm64, %v79, %v61
    %v83 = vsel %vm65, %v79, %v61
    %v84 = vld [vmem:[%s2] sm:$0xf]
    %v85 = vpack.c.bf16 %v38, %v38
    %v86 = vpack.c.bf16 %v39, %v39
    %v87 = vpack.c.bf16 %v40, %v40
    %v88 = vpack.c.bf16 %v41, %v41
    %90 = vset.pattern.permute.xlu0 2
    %91 = vperm.xlu0 %90, %v46
    %v92 = vpop.permute.xlu0 %91
    %vm94 = vcmask 64512
    %v96 = vsel %vm94, %v84, 0
    %vm98 = vcmask 1043456
    %v100 = vsel %vm98, %v85, 0
    %v103 = vsel %vm98, %v86, 0
    %v106 = vsel %vm98, %v87, 0
    %v109 = vsel %vm98, %v88, 0
    %111 = vmatprep.subr.bf16.mxu0 %v103
    %112 = vmatpush1.bf16.msra.mxu0 %v100
    %113 = vmatprep.subr.bf16.mxu0 0
    %114 = vmatpush1.bf16.msra.mxu0 0
    %115 = vmatprep.subr.bf16.mxu0 0
    %116 = vmatpush1.bf16.msra.mxu0 0
    %117 = vmatprep.subr.bf16.mxu0 0
    %118 = vmatpush1.bf16.msra.mxu0 0
    %119 = vmatprep.subr.bf16.mxu0 0
    %120 = vmatpush1.bf16.msra.mxu0 0
    %121 = vmatprep.subr.bf16.mxu0 0
    %122 = vmatpush1.bf16.msra.mxu0 0
    %123 = vmatprep.subr.bf16.mxu0 0
    %124 = vmatpush1.bf16.msra.mxu0 0
    %125 = vmatprep.subr.bf16.mxu0 0
    %126 = vmatpush1.bf16.msra.mxu0 0
    %127 = vmatprep.subr.bf16.mxu0 0
    %128 = vmatpush1.bf16.msra.mxu0 0
    %129 = vmatprep.subr.bf16.mxu0 0
    %130 = vmatpush1.bf16.msra.mxu0 0
    %131 = vmatprep.subr.bf16.mxu0 0
    %132 = vmatpush1.bf16.msra.mxu0 0
    %133 = vmatprep.subr.bf16.mxu0 0
    %134 = vmatpush1.bf16.msra.mxu0 0
    %135 = vmatprep.subr.bf16.mxu0 0
    %136 = vmatpush1.bf16.msra.mxu0 0
    %137 = vmatprep.subr.bf16.mxu0 0
    %138 = vmatpush1.bf16.msra.mxu0 0
    %139 = vmatprep.subr.bf16.mxu0 0
    %140 = vmatpush1.bf16.msra.mxu0 0
    %141 = vmatprep.subr.bf16.mxu0 0
    %142 = vmatpush1.bf16.msra.mxu0 0
    %143 = vmatprep.mubr.bf16.mxu0 0
    %144 = vmatmul.mubr.bf16.gmra.mrb[0].mxu0 %v96
    %v145 = vpop.f32.mrb[0].mxu0
    %v146 = vadd.f32 %v92, %v145
    %v147 = vpop.f32.mrb[0].mxu0
    %v148 = vadd.f32 %v92, %v147
    %v149 = vpop.f32.mrb[0].mxu0
    %v150 = vpop.f32.mrb[0].mxu0
    %151 = vdwg.mxu0
    %152 = vmatprep.subr.bf16.mxu0 %v109
    %153 = vmatpush1.bf16.msra.mxu0 %v106
    %154 = vmatprep.subr.bf16.mxu0 0
    %155 = vmatpush1.bf16.msra.mxu0 0
    %156 = vmatprep.subr.bf16.mxu0 0
    %157 = vmatpush1.bf16.msra.mxu0 0
    %158 = vmatprep.subr.bf16.mxu0 0
    %159 = vmatpush1.bf16.msra.mxu0 0
    %160 = vmatprep.subr.bf16.mxu0 0
    %161 = vmatpush1.bf16.msra.mxu0 0
    %162 = vmatprep.subr.bf16.mxu0 0
    %163 = vmatpush1.bf16.msra.mxu0 0
    %164 = vmatprep.subr.bf16.mxu0 0
    %165 = vmatpush1.bf16.msra.mxu0 0
    %166 = vmatprep.subr.bf16.mxu0 0
    %167 = vmatpush1.bf16.msra.mxu0 0
    %168 = vmatprep.subr.bf16.mxu0 0
    %169 = vmatpush1.bf16.msra.mxu0 0
    %170 = vmatprep.subr.bf16.mxu0 0
    %171 = vmatpush1.bf16.msra.mxu0 0
    %172 = vmatprep.subr.bf16.mxu0 0
    %173 = vmatpush1.bf16.msra.mxu0 0
    %174 = vmatprep.subr.bf16.mxu0 0
    %175 = vmatpush1.bf16.msra.mxu0 0
    %176 = vmatprep.subr.bf16.mxu0 0
    %177 = vmatpush1.bf16.msra.mxu0 0
    %178 = vmatprep.subr.bf16.mxu0 0
    %179 = vmatpush1.bf16.msra.mxu0 0
    %180 = vmatprep.subr.bf16.mxu0 0
    %181 = vmatpush1.bf16.msra.mxu0 0
    %182 = vmatprep.subr.bf16.mxu0 0
    %183 = vmatpush1.bf16.msra.mxu0 0
    %184 = vmatprep.mubr.bf16.mxu0 0
    %185 = vmatmul.mubr.bf16.gmra.mrb[0].mxu0 %v96
    %v186 = vpop.f32.mrb[0].mxu0
    %v187 = vadd.f32 %v92, %v186
    %v188 = vpop.f32.mrb[0].mxu0
    %v189 = vadd.f32 %v92, %v188
    %v190 = vpop.f32.mrb[0].mxu0
    %v191 = vpop.f32.mrb[0].mxu0
    %192 = vdwg.mxu0
    %v193 = vmax.f32 %v146, 0.0
    %v194 = vmax.f32 %v148, 0.0
    %v195 = vmax.f32 %v187, 0.0
    %v196 = vmax.f32 %v189, 0.0
    %v197 = vmul.f32 %v68, %v38
    %v198 = vmul.f32 %v69, %v39
    %v199 = vmul.f32 %v70, %v40
    %v200 = vmul.f32 %v71, %v41
    %v201 = vmul.f32 %v74, %v42
    %v202 = vmul.f32 %v75, %v43
    %v203 = vmul.f32 %v76, %v44
    %v204 = vmul.f32 %v77, %v45
    %v205 = vadd.f32 %v197, %v201
    %v206 = vadd.f32 %v198, %v202
    %v207 = vadd.f32 %v199, %v203
    %v208 = vadd.f32 %v200, %v204
    %v209 = vpack.c.bf16 %v205, %v193
    %v210 = vpack.c.bf16 %v206, %v194
    %v211 = vpack.c.bf16 %v207, %v195
    %v212 = vpack.c.bf16 %v208, %v196
    %v213 = vld [vmem:[%s3] sm:$0xf]
    %v214 = vld [vmem:[%s3 + $0x4] sm:$0xf]
    %v215 = vld [vmem:[%s3 + $0x8] sm:$0xf]
    %v216 = vld [vmem:[%s3 + $0xc] sm:$0xf]
    %217 = vset.pattern.permute.xlu0 0
    %218 = vperm.xlu0 %217, %v46
    %v219 = vpop.permute.xlu0 %218
    %222 = vset.pattern.permute.xlu0 0
    %223 = vperm.xlu0 %222, %v47
    %v224 = vpop.permute.xlu0 %223
    %227 = vset.pattern.permute.xlu0 0
    %228 = vperm.xlu0 %227, %v48
    %v229 = vpop.permute.xlu0 %228
    %232 = vset.pattern.permute.xlu0 0
    %233 = vperm.xlu0 %232, %v49
    %v234 = vpop.permute.xlu0 %233
    %v240 = vunpack.c.l.b16 %v213
    %v241 = vunpack.c.l.b16 %v214
    %v242 = vunpack.c.l.b16 %v215
    %v243 = vunpack.c.l.b16 %v216
    %v244 = vpack.c.b16 %v241, %v240
    %v245 = vpack.c.b16 %v243, %v242
    %vm246 = vcmask 97280
    %v248 = vsel %vm246, %v244, 0
    %v251 = vsel %vm246, %v245, 0
    %vm253 = vcmask 1045504
    %v255 = vsel %vm253, %v209, 0
    %v258 = vsel %vm253, %v210, 0
    %v261 = vsel %vm253, %v211, 0
    %v264 = vsel %vm253, %v212, 0
    %266 = vmatprep.subr.bf16.mxu0 %v258
    %267 = vmatpush1.bf16.msra.mxu0 %v255
    %268 = vmatprep.subr.bf16.mxu0 0
    %269 = vmatpush1.bf16.msra.mxu0 0
    %270 = vmatprep.subr.bf16.mxu0 0
    %271 = vmatpush1.bf16.msra.mxu0 0
    %272 = vmatprep.subr.bf16.mxu0 0
    %273 = vmatpush1.bf16.msra.mxu0 0
    %274 = vmatprep.subr.bf16.mxu0 0
    %275 = vmatpush1.bf16.msra.mxu0 0
    %276 = vmatprep.subr.bf16.mxu0 0
    %277 = vmatpush1.bf16.msra.mxu0 0
    %278 = vmatprep.subr.bf16.mxu0 0
    %279 = vmatpush1.bf16.msra.mxu0 0
    %280 = vmatprep.subr.bf16.mxu0 0
    %281 = vmatpush1.bf16.msra.mxu0 0
    %282 = vmatprep.subr.bf16.mxu0 0
    %283 = vmatpush1.bf16.msra.mxu0 0
    %284 = vmatprep.subr.bf16.mxu0 0
    %285 = vmatpush1.bf16.msra.mxu0 0
    %286 = vmatprep.subr.bf16.mxu0 0
    %287 = vmatpush1.bf16.msra.mxu0 0
    %288 = vmatprep.subr.bf16.mxu0 0
    %289 = vmatpush1.bf16.msra.mxu0 0
    %290 = vmatprep.subr.bf16.mxu0 0
    %291 = vmatpush1.bf16.msra.mxu0 0
    %292 = vmatprep.subr.bf16.mxu0 0
    %293 = vmatpush1.bf16.msra.mxu0 0
    %294 = vmatprep.subr.bf16.mxu0 0
    %295 = vmatpush1.bf16.msra.mxu0 0
    %296 = vmatprep.subr.bf16.mxu0 0
    %297 = vmatpush1.bf16.msra.mxu0 0
    %298 = vmatprep.mubr.bf16.mxu0 0
    %299 = vmatmul.mubr.bf16.gmra.mrb[0].mxu0 %v248
    %v300 = vpop.f32.mrb[0].mxu0
    %v301 = vadd.f32 %v219, %v300
    %v302 = vpop.f32.mrb[0].mxu0
    %v303 = vadd.f32 %v219, %v302
    %v304 = vpop.f32.mrb[0].mxu0
    %v305 = vadd.f32 %v224, %v304
    %v306 = vpop.f32.mrb[0].mxu0
    %v307 = vadd.f32 %v224, %v306
    %308 = vmatprep.mubr.bf16.mxu0 0
    %309 = vmatmul.mubr.bf16.gmra.mrb[0].mxu0 %v251
    %v310 = vpop.f32.mrb[0].mxu0
    %v311 = vadd.f32 %v229, %v310
    %v312 = vpop.f32.mrb[0].mxu0
    %v313 = vadd.f32 %v229, %v312
    %v314 = vpop.f32.mrb[0].mxu0
    %v315 = vadd.f32 %v234, %v314
    %v316 = vpop.f32.mrb[0].mxu0
    %v317 = vadd.f32 %v234, %v316
    %318 = vdwg.mxu0
    %319 = vmatprep.subr.bf16.mxu0 %v264
    %320 = vmatpush1.bf16.msra.mxu0 %v261
    %321 = vmatprep.subr.bf16.mxu0 0
    %322 = vmatpush1.bf16.msra.mxu0 0
    %323 = vmatprep.subr.bf16.mxu0 0
    %324 = vmatpush1.bf16.msra.mxu0 0
    %325 = vmatprep.subr.bf16.mxu0 0
    %326 = vmatpush1.bf16.msra.mxu0 0
    %327 = vmatprep.subr.bf16.mxu0 0
    %328 = vmatpush1.bf16.msra.mxu0 0
    %329 = vmatprep.subr.bf16.mxu0 0
    %330 = vmatpush1.bf16.msra.mxu0 0
    %331 = vmatprep.subr.bf16.mxu0 0
    %332 = vmatpush1.bf16.msra.mxu0 0
    %333 = vmatprep.subr.bf16.mxu0 0
    %334 = vmatpush1.bf16.msra.mxu0 0
    %335 = vmatprep.subr.bf16.mxu0 0
    %336 = vmatpush1.bf16.msra.mxu0 0
    %337 = vmatprep.subr.bf16.mxu0 0
    %338 = vmatpush1.bf16.msra.mxu0 0
    %339 = vmatprep.subr.bf16.mxu0 0
    %340 = vmatpush1.bf16.msra.mxu0 0
    %341 = vmatprep.subr.bf16.mxu0 0
    %342 = vmatpush1.bf16.msra.mxu0 0
    %343 = vmatprep.subr.bf16.mxu0 0
    %344 = vmatpush1.bf16.msra.mxu0 0
    %345 = vmatprep.subr.bf16.mxu0 0
    %346 = vmatpush1.bf16.msra.mxu0 0
    %347 = vmatprep.subr.bf16.mxu0 0
    %348 = vmatpush1.bf16.msra.mxu0 0
    %349 = vmatprep.subr.bf16.mxu0 0
    %350 = vmatpush1.bf16.msra.mxu0 0
    %351 = vmatprep.mubr.bf16.mxu0 0
    %352 = vmatmul.mubr.bf16.gmra.mrb[0].mxu0 %v248
    %v353 = vpop.f32.mrb[0].mxu0
    %v354 = vadd.f32 %v219, %v353
    %v355 = vpop.f32.mrb[0].mxu0
    %v356 = vadd.f32 %v219, %v355
    %v357 = vpop.f32.mrb[0].mxu0
    %v358 = vadd.f32 %v224, %v357
    %v359 = vpop.f32.mrb[0].mxu0
    %v360 = vadd.f32 %v224, %v359
    %361 = vmatprep.mubr.bf16.mxu0 0
    %362 = vmatmul.mubr.bf16.gmra.mrb[0].mxu0 %v251
    %v363 = vpop.f32.mrb[0].mxu0
    %v364 = vadd.f32 %v229, %v363
    %v365 = vpop.f32.mrb[0].mxu0
    %v366 = vadd.f32 %v229, %v365
    %v367 = vpop.f32.mrb[0].mxu0
    %v368 = vadd.f32 %v234, %v367
    %v369 = vpop.f32.mrb[0].mxu0
    %v370 = vadd.f32 %v234, %v369
    %371 = vdwg.mxu0
    %372 = vset.pattern.permute.xlu0 1
    %373 = vperm.xlu0 %372, %v46
    %v374 = vpop.permute.xlu0 %373
    %376 = vset.pattern.permute.xlu0 1
    %377 = vperm.xlu0 %376, %v47
    %v378 = vpop.permute.xlu0 %377
    %380 = vset.pattern.permute.xlu0 1
    %381 = vperm.xlu0 %380, %v48
    %v382 = vpop.permute.xlu0 %381
    %384 = vset.pattern.permute.xlu0 1
    %385 = vperm.xlu0 %384, %v49
    %v386 = vpop.permute.xlu0 %385
    %v388 = vmul.f32 %v374, %v80
    %v389 = vmul.f32 %v374, %v81
    %v390 = vmul.f32 %v374, %v82
    %v391 = vmul.f32 %v374, %v83
    %v392 = vmul.f32 %v378, %v80
    %v393 = vmul.f32 %v378, %v81
    %v394 = vmul.f32 %v378, %v82
    %v395 = vmul.f32 %v378, %v83
    %v396 = vmul.f32 %v382, %v80
    %v397 = vmul.f32 %v382, %v81
    %v398 = vmul.f32 %v382, %v82
    %v399 = vmul.f32 %v382, %v83
    %v400 = vmul.f32 %v386, %v80
    %v401 = vmul.f32 %v386, %v81
    %v402 = vmul.f32 %v386, %v82
    %v403 = vmul.f32 %v386, %v83
    %v404 = vadd.f32 %v301, %v388
    %v405 = vadd.f32 %v303, %v389
    %v406 = vadd.f32 %v354, %v390
    %v407 = vadd.f32 %v356, %v391
    %v408 = vadd.f32 %v305, %v392
    %v409 = vadd.f32 %v307, %v393
    %v410 = vadd.f32 %v358, %v394
    %v411 = vadd.f32 %v360, %v395
    %v412 = vadd.f32 %v311, %v396
    %v413 = vadd.f32 %v313, %v397
    %v414 = vadd.f32 %v364, %v398
    %v415 = vadd.f32 %v366, %v399
    %v416 = vadd.f32 %v315, %v400
    %v417 = vadd.f32 %v317, %v401
    %v418 = vadd.f32 %v368, %v402
    %v419 = vadd.f32 %v370, %v403
    %v420 = vmul.f32 %v404, %v404
    %v421 = vmul.f32 %v405, %v405
    %v422 = vmul.f32 %v406, %v406
    %v423 = vmul.f32 %v407, %v407
    %v424 = vmul.f32 %v408, %v408
    %v425 = vmul.f32 %v409, %v409
    %v426 = vmul.f32 %v410, %v410
    %v427 = vmul.f32 %v411, %v411
    %v428 = vmul.f32 %v412, %v412
    %v429 = vmul.f32 %v413, %v413
    %v430 = vmul.f32 %v414, %v414
    %v431 = vmul.f32 %v415, %v415
    %v432 = vmul.f32 %v416, %v416
    %v433 = vmul.f32 %v417, %v417
    %v434 = vmul.f32 %v418, %v418
    %v435 = vmul.f32 %v419, %v419
    %v436 = vmul.f32 %v404, %v420
    %v437 = vmul.f32 %v405, %v421
    %v438 = vmul.f32 %v406, %v422
    %v439 = vmul.f32 %v407, %v423
    %v440 = vmul.f32 %v408, %v424
    %v441 = vmul.f32 %v409, %v425
    %v442 = vmul.f32 %v410, %v426
    %v443 = vmul.f32 %v411, %v427
    %v444 = vmul.f32 %v412, %v428
    %v445 = vmul.f32 %v413, %v429
    %v446 = vmul.f32 %v414, %v430
    %v447 = vmul.f32 %v415, %v431
    %v448 = vmul.f32 %v416, %v432
    %v449 = vmul.f32 %v417, %v433
    %v450 = vmul.f32 %v418, %v434
    %v451 = vmul.f32 %v419, %v435
    %v452 = vmul.f32 %v436, 0.044715
    %v453 = vmul.f32 %v437, 0.044715
    %v454 = vmul.f32 %v438, 0.044715
    %v455 = vmul.f32 %v439, 0.044715
    %v456 = vmul.f32 %v440, 0.044715
    %v457 = vmul.f32 %v441, 0.044715
    %v458 = vmul.f32 %v442, 0.044715
    %v459 = vmul.f32 %v443, 0.044715
    %v460 = vmul.f32 %v444, 0.044715
    %v461 = vmul.f32 %v445, 0.044715
    %v462 = vmul.f32 %v446, 0.044715
    %v463 = vmul.f32 %v447, 0.044715
    %v464 = vmul.f32 %v448, 0.044715
    %v465 = vmul.f32 %v449, 0.044715
    %v466 = vmul.f32 %v450, 0.044715
    %v467 = vmul.f32 %v451, 0.044715
    %v468 = vadd.f32 %v404, %v452
    %v469 = vadd.f32 %v405, %v453
    %v470 = vadd.f32 %v406, %v454
    %v471 = vadd.f32 %v407, %v455
    %v472 = vadd.f32 %v408, %v456
    %v473 = vadd.f32 %v409, %v457
    %v474 = vadd.f32 %v410, %v458
    %v475 = vadd.f32 %v411, %v459
    %v476 = vadd.f32 %v412, %v460
    %v477 = vadd.f32 %v413, %v461
    %v478 = vadd.f32 %v414, %v462
    %v479 = vadd.f32 %v415, %v463
    %v480 = vadd.f32 %v416, %v464
    %v481 = vadd.f32 %v417, %v465
    %v482 = vadd.f32 %v418, %v466
    %v483 = vadd.f32 %v419, %v467
    %v484 = vmul.f32 %v468, 0.7978846
    %v485 = vmul.f32 %v469, 0.7978846
    %v486 = vmul.f32 %v470, 0.7978846
    %v487 = vmul.f32 %v471, 0.7978846
    %v488 = vmul.f32 %v472, 0.7978846
    %v489 = vmul.f32 %v473, 0.7978846
    %v490 = vmul.f32 %v474, 0.7978846
    %v491 = vmul.f32 %v475, 0.7978846
    %v492 = vmul.f32 %v476, 0.7978846
    %v493 = vmul.f32 %v477, 0.7978846
    %v494 = vmul.f32 %v478, 0.7978846
    %v495 = vmul.f32 %v479, 0.7978846
    %v496 = vmul.f32 %v480, 0.7978846
    %v497 = vmul.f32 %v481, 0.7978846
    %v498 = vmul.f32 %v482, 0.7978846
    %v499 = vmul.f32 %v483, 0.7978846
    %v500 = vtanh.pop %v484
    %v501 = vtanh.pop %v485
    %v502 = vtanh.pop %v486
    %v503 = vtanh.pop %v487
    %v504 = vtanh.pop %v488
    %v505 = vtanh.pop %v489
    %v506 = vtanh.pop %v490
    %v507 = vtanh.pop %v491
    %v508 = vtanh.pop %v492
    %v509 = vtanh.pop %v493
    %v510 = vtanh.pop %v494
    %v511 = vtanh.pop %v495
    %v512 = vtanh.pop %v496
    %v513 = vtanh.pop %v497
    %v514 = vtanh.pop %v498
    %v515 = vtanh.pop %v499
    %v516 = vadd.f32 %v500, 1.0
    %v517 = vadd.f32 %v501, 1.0
    %v518 = vadd.f32 %v502, 1.0
    %v519 = vadd.f32 %v503, 1.0
    %v520 = vadd.f32 %v504, 1.0
    %v521 = vadd.f32 %v505, 1.0
    %v522 = vadd.f32 %v506, 1.0
    %v523 = vadd.f32 %v507, 1.0
    %v524 = vadd.f32 %v508, 1.0
    %v525 = vadd.f32 %v509, 1.0
    %v526 = vadd.f32 %v510, 1.0
    %v527 = vadd.f32 %v511, 1.0
    %v528 = vadd.f32 %v512, 1.0
    %v529 = vadd.f32 %v513, 1.0
    %v530 = vadd.f32 %v514, 1.0
    %v531 = vadd.f32 %v515, 1.0
    %v532 = vmul.f32 %v516, 0.5
    %v533 = vmul.f32 %v517, 0.5
    %v534 = vmul.f32 %v518, 0.5
    %v535 = vmul.f32 %v519, 0.5
    %v536 = vmul.f32 %v520, 0.5
    %v537 = vmul.f32 %v521, 0.5
    %v538 = vmul.f32 %v522, 0.5
    %v539 = vmul.f32 %v523, 0.5
    %v540 = vmul.f32 %v524, 0.5
    %v541 = vmul.f32 %v525, 0.5
    %v542 = vmul.f32 %v526, 0.5
    %v543 = vmul.f32 %v527, 0.5
    %v544 = vmul.f32 %v528, 0.5
    %v545 = vmul.f32 %v529, 0.5
    %v546 = vmul.f32 %v530, 0.5
    %v547 = vmul.f32 %v531, 0.5
    %v548 = vmul.f32 %v404, %v532
    %v549 = vmul.f32 %v405, %v533
    %v550 = vmul.f32 %v406, %v534
    %v551 = vmul.f32 %v407, %v535
    %v552 = vmul.f32 %v408, %v536
    %v553 = vmul.f32 %v409, %v537
    %v554 = vmul.f32 %v410, %v538
    %v555 = vmul.f32 %v411, %v539
    %v556 = vmul.f32 %v412, %v540
    %v557 = vmul.f32 %v413, %v541
    %v558 = vmul.f32 %v414, %v542
    %v559 = vmul.f32 %v415, %v543
    %v560 = vmul.f32 %v416, %v544
    %v561 = vmul.f32 %v417, %v545
    %v562 = vmul.f32 %v418, %v546
    %v563 = vmul.f32 %v419, %v547
    %v564 = vld [vmem:[%s4] sm:$0x3]
    %v565 = vpack.c.bf16 %v552, %v548
    %v566 = vpack.c.bf16 %v553, %v549
    %v567 = vpack.c.bf16 %v554, %v550
    %v568 = vpack.c.bf16 %v555, %v551
    %v569 = vpack.c.bf16 %v560, %v556
    %v570 = vpack.c.bf16 %v561, %v557
    %v571 = vpack.c.bf16 %v562, %v558
    %v572 = vpack.c.bf16 %v563, %v559
    %574 = vset.pattern.permute.xlu0 3
    %575 = vperm.xlu0 %574, %v50
    %v576 = vpop.permute.xlu0 %575
    %vm578 = vcmask 261120
    %v580 = vsel %vm578, %v564, 0
    %582 = vmatprep.subr.bf16.mxu0 %v566
    %583 = vmatpush1.bf16.msra.mxu0 %v565
    %584 = vmatprep.subr.bf16.mxu0 %v570
    %585 = vmatpush1.bf16.msra.mxu0 %v569
    %586 = vmatprep.subr.bf16.mxu0 0
    %587 = vmatpush1.bf16.msra.mxu0 0
    %588 = vmatprep.subr.bf16.mxu0 0
    %589 = vmatpush1.bf16.msra.mxu0 0
    %590 = vmatprep.subr.bf16.mxu0 0
    %591 = vmatpush1.bf16.msra.mxu0 0
    %592 = vmatprep.subr.bf16.mxu0 0
    %593 = vmatpush1.bf16.msra.mxu0 0
    %594 = vmatprep.subr.bf16.mxu0 0
    %595 = vmatpush1.bf16.msra.mxu0 0
    %596 = vmatprep.subr.bf16.mxu0 0
    %597 = vmatpush1.bf16.msra.mxu0 0
    %598 = vmatprep.subr.bf16.mxu0 0
    %599 = vmatpush1.bf16.msra.mxu0 0
    %600 = vmatprep.subr.bf16.mxu0 0
    %601 = vmatpush1.bf16.msra.mxu0 0
    %602 = vmatprep.subr.bf16.mxu0 0
    %603 = vmatpush1.bf16.msra.mxu0 0
    %604 = vmatprep.subr.bf16.mxu0 0
    %605 = vmatpush1.bf16.msra.mxu0 0
    %606 = vmatprep.subr.bf16.mxu0 0
    %607 = vmatpush1.bf16.msra.mxu0 0
    %608 = vmatprep.subr.bf16.mxu0 0
    %609 = vmatpush1.bf16.msra.mxu0 0
    %610 = vmatprep.subr.bf16.mxu0 0
    %611 = vmatpush1.bf16.msra.mxu0 0
    %612 = vmatprep.subr.bf16.mxu0 0
    %613 = vmatpush1.bf16.msra.mxu0 0
    %614 = vmatprep.mubr.bf16.mxu0 0
    %615 = vmatmul.mubr.bf16.gmra.mrb[0].mxu0 %v580
    %v616 = vpop.f32.mrb[0].mxu0
    %v617 = vadd.f32 %v576, %v616
    %v618 = vpop.f32.mrb[0].mxu0
    %v619 = vadd.f32 %v576, %v618
    %v620 = vpop.f32.mrb[0].mxu0
    %v621 = vpop.f32.mrb[0].mxu0
    %622 = vdwg.mxu0
    %623 = vmatprep.subr.bf16.mxu0 %v568
    %624 = vmatpush1.bf16.msra.mxu0 %v567
    %625 = vmatprep.subr.bf16.mxu0 %v572
    %626 = vmatpush1.bf16.msra.mxu0 %v571
    %627 = vmatprep.subr.bf16.mxu0 0
    %628 = vmatpush1.bf16.msra.mxu0 0
    %629 = vmatprep.subr.bf16.mxu0 0
    %630 = vmatpush1.bf16.msra.mxu0 0
    %631 = vmatprep.subr.bf16.mxu0 0
    %632 = vmatpush1.bf16.msra.mxu0 0
    %633 = vmatprep.subr.bf16.mxu0 0
    %634 = vmatpush1.bf16.msra.mxu0 0
    %635 = vmatprep.subr.bf16.mxu0 0
    %636 = vmatpush1.bf16.msra.mxu0 0
    %637 = vmatprep.subr.bf16.mxu0 0
    %638 = vmatpush1.bf16.msra.mxu0 0
    %639 = vmatprep.subr.bf16.mxu0 0
    %640 = vmatpush1.bf16.msra.mxu0 0
    %641 = vmatprep.subr.bf16.mxu0 0
    %642 = vmatpush1.bf16.msra.mxu0 0
    %643 = vmatprep.subr.bf16.mxu0 0
    %644 = vmatpush1.bf16.msra.mxu0 0
    %645 = vmatprep.subr.bf16.mxu0 0
    %646 = vmatpush1.bf16.msra.mxu0 0
    %647 = vmatprep.subr.bf16.mxu0 0
    %648 = vmatpush1.bf16.msra.mxu0 0
    %649 = vmatprep.subr.bf16.mxu0 0
    %650 = vmatpush1.bf16.msra.mxu0 0
    %651 = vmatprep.subr.bf16.mxu0 0
    %652 = vmatpush1.bf16.msra.mxu0 0
    %653 = vmatprep.subr.bf16.mxu0 0
    %654 = vmatpush1.bf16.msra.mxu0 0
    %655 = vmatprep.mubr.bf16.mxu0 0
    %656 = vmatmul.mubr.bf16.gmra.mrb[0].mxu0 %v580
    %v657 = vpop.f32.mrb[0].mxu0
    %v658 = vadd.f32 %v576, %v657
    %v659 = vpop.f32.mrb[0].mxu0
    %v660 = vadd.f32 %v576, %v659
    %v661 = vpop.f32.mrb[0].mxu0
    %v662 = vpop.f32.mrb[0].mxu0
    %663 = vdwg.mxu0
    %v664 = vsub.f32 %v42, %v617
    %v665 = vsub.f32 %v43, %v619
    %v666 = vsub.f32 %v44, %v658
    %v667 = vsub.f32 %v45, %v660
    %v668 = vand.u32 2147483647, %v664
    %v669 = vand.u32 2147483647, %v665
    %v670 = vand.u32 2147483647, %v666
    %v671 = vand.u32 2147483647, %v667
    %v672 = vsel %vm98, %v668, 0.0
    %v673 = vrot.slane %v672, 4
    %v674 = vadd.f32 %v672, %v673
    %v675 = vrot.slane %v674, 2
    %v676 = vadd.f32 %v674, %v675
    %v677 = vrot.slane %v676, 1
    %v678 = vadd.f32 %v676, %v677
    %v679 = vsel %vm98, %v669, 0.0
    %v680 = vrot.slane %v679, 4
    %v681 = vadd.f32 %v679, %v680
    %v682 = vrot.slane %v681, 2
    %v683 = vadd.f32 %v681, %v682
    %v684 = vrot.slane %v683, 1
    %v685 = vadd.f32 %v683, %v684
    %v686 = vsel %vm98, %v670, 0.0
    %v687 = vrot.slane %v686, 4
    %v688 = vadd.f32 %v686, %v687
    %v689 = vrot.slane %v688, 2
    %v690 = vadd.f32 %v688, %v689
    %v691 = vrot.slane %v690, 1
    %v692 = vadd.f32 %v690, %v691
    %v693 = vsel %vm98, %v671, 0.0
    %v694 = vrot.slane %v693, 4
    %v695 = vadd.f32 %v693, %v694
    %v696 = vrot.slane %v695, 2
    %v697 = vadd.f32 %v695, %v696
    %v698 = vrot.slane %v697, 1
    %v699 = vadd.f32 %v697, %v698
    %v700 = vmul.f32 %v678, 0.00048828125
    %v701 = vmul.f32 %v685, 0.00048828125
    %v702 = vmul.f32 %v692, 0.00048828125
    %v703 = vmul.f32 %v699, 0.00048828125
    %v704 = vand.u32 2147483647, %v193
    %v705 = vand.u32 2147483647, %v194
    %v706 = vand.u32 2147483647, %v195
    %v707 = vand.u32 2147483647, %v196
    %v708 = vrot.slane %v704, 4
    %v709 = vadd.f32 %v704, %v708
    %v710 = vrot.slane %v709, 2
    %v711 = vadd.f32 %v709, %v710
    %v712 = vrot.slane %v711, 1
    %v713 = vadd.f32 %v711, %v712
    %v714 = vrot.slane %v705, 4
    %v715 = vadd.f32 %v705, %v714
    %v716 = vrot.slane %v715, 2
    %v717 = vadd.f32 %v715, %v716
    %v718 = vrot.slane %v717, 1
    %v719 = vadd.f32 %v717, %v718
    %v720 = vrot.slane %v706, 4
    %v721 = vadd.f32 %v706, %v720
    %v722 = vrot.slane %v721, 2
    %v723 = vadd.f32 %v721, %v722
    %v724 = vrot.slane %v723, 1
    %v725 = vadd.f32 %v723, %v724
    %v726 = vrot.slane %v707, 4
    %v727 = vadd.f32 %v707, %v726
    %v728 = vrot.slane %v727, 2
    %v729 = vadd.f32 %v727, %v728
    %v730 = vrot.slane %v729, 1
    %v731 = vadd.f32 %v729, %v730
    %v732 = vmul.f32 %v713, 2.4414064e-07
    %v733 = vmul.f32 %v719, 2.4414064e-07
    %v734 = vmul.f32 %v725, 2.4414064e-07
    %v735 = vmul.f32 %v731, 2.4414064e-07
    %v736 = vadd.f32 %v700, %v732
    %v737 = vadd.f32 %v701, %v733
    %v738 = vadd.f32 %v702, %v734
    %v739 = vadd.f32 %v703, %v735
    %vm740 = vcmask 1040384
    %v741 = vsel %vm740, %v736, 0.0
    %v742 = vsel %vm740, %v737, 0.0
    %v743 = vadd.f32 %v741, %v742
    %v744 = vsel %vm740, %v738, 0.0
    %v745 = vadd.f32 %v743, %v744
    %v746 = vsel %vm740, %v739, 0.0
    %v747 = vadd.f32 %v745, %v746
    %748 = vadd.xlane.f32.xlu0 %v747
    %v749 = vpop.xlane.xlu0 %748
    %v750 = vrot.slane %v749, 4
    %v751 = vadd.f32 %v749, %v750
    %v752 = vrot.slane %v751, 2
    %v753 = vadd.f32 %v751, %v752
    %v754 = vrot.slane %v753, 1
    %v755 = vadd.f32 %v753, %v754
    %s756 = vtos %v755
    %s757 = scalar_lea.smem [#allocation5], 0
    %758 = sst [smem:[%s757]] %s756
    // Predicated region
    $region30: #{gaussian_diffusion_forward.21} parent=1 // pred_check
      _
    $region31: #{gaussian_diffusion_forward.21} parent=1 // pred_check_branch
      %760 = sbr.rel (0) target = $region33
    $region32: #{gaussian_diffusion_forward.21} parent=1 // pred_region
      %s762 = ssub.s32 16, 16
      %763 = vsyncadd [#allocation3], %s762
      %766 = dma.smem_to_hbm [#allocation5], 16, %s6, [#allocation3]
    $region33: #{gaussian_diffusion_forward.21} parent=1 // pred_fallthru
      _
    // Predicated region
    $region34: #{gaussian_diffusion_forward.21} parent=1 // pred_check
      _
    $region35: #{gaussian_diffusion_forward.21} parent=1 // pred_check_branch
      %768 = sbr.rel (0) target = $region37
    $region36: #{gaussian_diffusion_forward.21} parent=1 // pred_region
      %769 = dma.done [#allocation3], 16
    $region37: #{gaussian_diffusion_forward.21} parent=1 // pred_fallthru
      _
    %770 = sfence
    %771 = vsyncpa [#allocation3], 1
    %772 = vsyncpa [#allocation4], 1

</llo_original>
